<compile_context>
chip_gen: v7x
topology: tpu7x:2x2x1
jax: 0.10.0
libtpu: 0.0.40
codegen_flags: <defaults>
</compile_context>

<pallas_src>
import jax
import jax.numpy as jnp
from jax.experimental import pallas as pl
from jax.experimental.pallas import tpu as pltpu


def mlp_kernel(x_ref, w1_ref, b1_ref, w2_ref, b2_ref, o_ref):
    # fc1 on the MXU: [tb, in](bf16) @ [in, hidden](bf16) -> f32 accumulation.
    h = jnp.dot(x_ref[...], w1_ref[...], preferred_element_type=jnp.float32)
    h = jnp.maximum(h + b1_ref[...], 0.0)            # bias + ReLU on the VPU (f32)

    # fc2: an N=1 matmul would waste the MXU -> VPU multiply + lane reduce.
    w2_row = w2_ref[...].astype(jnp.float32)         # [1, hidden]
    y = jnp.sum(h * w2_row, axis=-1) + b2_ref[0, 0]  # [tb]; scalar bias from SMEM

    # Lane-dense store: one [1, 1, tb] row per grid step.
    o_ref[...] = y.reshape(1, 1, -1).astype(o_ref.dtype)


def simple_nn_forward(x, w1, b1, w2, b2, *, tb=1024):
    """x: [B, in] f32; w1: [in, hidden]; b1: [1, hidden]; w2: [hidden, 1]; b2: [1, 1]."""
    B, in_dim = x.shape
    hidden = w1.shape[1]

    # --- tile selection -----------------------------------------------------
    # Big tiles amortize per-grid-step overhead; cap so we keep >= 2 grid
    # steps when B allows it (v7x megacore).  Round up to 8 sublanes.
    tb_eff = min(tb, B)
    if B >= 16:
        tb_eff = min(tb_eff, pl.cdiv(B, 2))
    tb_eff = max(8, ((tb_eff + 7) // 8) * 8)
    num_blocks = pl.cdiv(B, tb_eff)
    B_pad = num_blocks * tb_eff

    if B_pad != B:
        x = jnp.pad(x, ((0, B_pad - B), (0, 0)))

    # bf16 activations/weights (f32 accumulation in-kernel); biases stay f32.
    # In production the caller would supply bf16 directly to avoid this cast.
    x_bf = x.astype(jnp.bfloat16)
    w1_bf = w1.astype(jnp.bfloat16)
    w2_row = w2.reshape(1, hidden).astype(jnp.bfloat16)
    b1_2d = b1.reshape(1, hidden).astype(jnp.float32)
    b2_2d = b2.reshape(1, 1).astype(jnp.float32)

    out = pl.pallas_call(
        mlp_kernel,
        out_shape=jax.ShapeDtypeStruct((num_blocks, 1, tb_eff), jnp.float32),
        grid_spec=pltpu.PrefetchScalarGridSpec(
            num_scalar_prefetch=0,
            grid=(num_blocks,),
            in_specs=[
                pl.BlockSpec((tb_eff, in_dim), lambda i: (i, 0)),     # streamed x tile
                pl.BlockSpec((in_dim, hidden), lambda i: (0, 0)),     # resident W1
                pl.BlockSpec((1, hidden), lambda i: (0, 0)),          # resident b1 (f32)
                pl.BlockSpec((1, hidden), lambda i: (0, 0)),          # resident w2 row
                pl.BlockSpec(memory_space=pltpu.MemorySpace.SMEM),    # b2 scalar
            ],
            out_specs=pl.BlockSpec((1, 1, tb_eff), lambda i: (i, 0, 0)),
        ),
        compiler_params=pltpu.CompilerParams(
            dimension_semantics=("parallel",),
        ),
    )(x_bf, w1_bf, b1_2d, w2_row, b2_2d)

    # (num_blocks, 1, tb) -> (B_pad, 1) -> (B, 1)
    return out.reshape(B_pad, 1)[:B]


def init_params(key, input_size, hidden_size=128, dtype=jnp.float32):
    # PyTorch nn.Linear default init: U(-1/sqrt(fan_in), +1/sqrt(fan_in)).
    # Weights stored pre-transposed vs PyTorch so the kernel does plain x @ W.
    k1, k2, k3, k4 = jax.random.split(key, 4)
    bound1 = 1.0 / jnp.sqrt(jnp.array(input_size, dtype))
    bound2 = 1.0 / jnp.sqrt(jnp.array(hidden_size, dtype))
    w1 = jax.random.uniform(k1, (input_size, hidden_size), dtype, -bound1, bound1)
    b1 = jax.random.uniform(k2, (1, hidden_size), dtype, -bound1, bound1)
    w2 = jax.random.uniform(k3, (hidden_size, 1), dtype, -bound2, bound2)
    b2 = jax.random.uniform(k4, (1, 1), dtype, -bound2, bound2)
    return w1, b1, w2, b2


if __name__ == "__main__":
    input_size = 32
    hidden_size = 128
    batch = 256  # small, but enough for a multi-step lane-dense grid

    key = jax.random.PRNGKey(0)
    kx, kp = jax.random.split(key)
    x = jax.random.normal(kx, (batch, input_size), jnp.float32)
    w1, b1, w2, b2 = init_params(kp, input_size, hidden_size)

    out = simple_nn_forward(x, w1, b1, w2, b2)
    jax.block_until_ready(out)

    # Reference with the same bf16 rounding of x/W1/W2 the kernel uses
    # (f32 accumulation), so the check stays tight.
    xb = x.astype(jnp.bfloat16).astype(jnp.float32)
    w1b = w1.astype(jnp.bfloat16).astype(jnp.float32)
    w2b = w2.astype(jnp.bfloat16).astype(jnp.float32)
    ref = jnp.maximum(xb @ w1b + b1, 0.0) @ w2b + b2

    assert out.shape == (batch, 1)
    assert jnp.allclose(out, ref, atol=2e-3, rtol=2e-3), float(jnp.max(jnp.abs(out - ref)))

    print("KERNEL_OK")
</pallas_src>

<mosaic_0001>
module attributes {stable_mosaic.version = 11 : i64} {
  func.func @mlp_kernel(%arg0: i32, %arg1: memref<128x32xbf16, #tpu.memory_space<vmem>>, %arg2: memref<32x128xbf16, #tpu.memory_space<vmem>>, %arg3: memref<1x128xf32, #tpu.memory_space<vmem>>, %arg4: memref<1x128xbf16, #tpu.memory_space<vmem>>, %arg5: memref<1x1xf32, #tpu.memory_space<smem>>, %arg6: memref<1x1x128xf32, #tpu.memory_space<vmem>>) attributes {dimension_semantics = [#tpu.dimension_semantics<parallel>], iteration_bounds = array<i64: 2>, scalar_prefetch = 0 : i64, scratch_operands = 0 : i64, tpu.core_type = #tpu.core_type<tc>, window_params = [{transform_indices = @transform_0, window_bounds = array<i64: 128, 32>}, {pipeline_mode = #tpu.pipeline_mode<synchronous>, transform_indices = @transform_1, window_bounds = array<i64: 32, 128>}, {pipeline_mode = #tpu.pipeline_mode<synchronous>, transform_indices = @transform_2, window_bounds = array<i64: 1, 128>}, {pipeline_mode = #tpu.pipeline_mode<synchronous>, transform_indices = @transform_3, window_bounds = array<i64: 1, 128>}, {transform_indices = @transform_4, window_bounds = array<i64: 1, 1>}, {transform_indices = @transform_5, window_bounds = array<i64: 1, 1, 128>}]} {
    %c0 = arith.constant 0 : index
    %c0_0 = arith.constant 0 : index
    %0 = vector.load %arg1[%c0, %c0_0] : memref<128x32xbf16, #tpu.memory_space<vmem>>, vector<128x32xbf16>
    %c0_1 = arith.constant 0 : index
    %c0_2 = arith.constant 0 : index
    %1 = vector.load %arg2[%c0_1, %c0_2] : memref<32x128xbf16, #tpu.memory_space<vmem>>, vector<32x128xbf16>
    %cst = arith.constant dense<0.000000e+00> : vector<128x128xf32>
    %2 = tpu.matmul %0, %1, %cst {dimension_numbers = #tpu.dot_dimension_numbers<[1], [0], [0], [1], [0, 0, 1, 1], [], []>} : vector<128x32xbf16>, vector<32x128xbf16>, vector<128x128xf32> -> vector<128x128xf32>
    %c0_3 = arith.constant 0 : index
    %c0_4 = arith.constant 0 : index
    %3 = vector.load %arg3[%c0_3, %c0_4] : memref<1x128xf32, #tpu.memory_space<vmem>>, vector<1x128xf32>
    %4 = vector.broadcast %3 : vector<1x128xf32> to vector<128x128xf32>
    %5 = arith.addf %2, %4 : vector<128x128xf32>
    %cst_5 = arith.constant 0.000000e+00 : f32
    %6 = vector.broadcast %cst_5 : f32 to vector<128x128xf32>
    %7 = arith.maximumf %5, %6 : vector<128x128xf32>
    %c0_6 = arith.constant 0 : index
    %c0_7 = arith.constant 0 : index
    %8 = vector.load %arg4[%c0_6, %c0_7] : memref<1x128xbf16, #tpu.memory_space<vmem>>, vector<1x128xbf16>
    %9 = arith.extf %8 : vector<1x128xbf16> to vector<1x128xf32>
    %10 = vector.broadcast %9 : vector<1x128xf32> to vector<128x128xf32>
    %11 = arith.mulf %7, %10 : vector<128x128xf32>
    %cst_8 = arith.constant dense<0.000000e+00> : vector<128xf32>
    %12 = vector.multi_reduction <add>, %11, %cst_8 [1] : vector<128x128xf32> to vector<128xf32>
    %c0_9 = arith.constant 0 : index
    %c0_10 = arith.constant 0 : index
    %13 = memref.load %arg5[%c0_9, %c0_10] : memref<1x1xf32, #tpu.memory_space<smem>>
    %14 = vector.broadcast %13 : f32 to vector<128xf32>
    %15 = arith.addf %12, %14 : vector<128xf32>
    %16 = vector.shape_cast %15 : vector<128xf32> to vector<1x1x128xf32>
    %c0_11 = arith.constant 0 : index
    %c0_12 = arith.constant 0 : index
    %c0_13 = arith.constant 0 : index
    %17 = vector.load %arg6[%c0_11, %c0_12, %c0_13] : memref<1x1x128xf32, #tpu.memory_space<vmem>>, vector<1x1x128xf32>
    tpu.vector_store %arg6[%c0_11, %c0_12, %c0_13], %16 {strides = array<i32>} : memref<1x1x128xf32, #tpu.memory_space<vmem>>, vector<1x1x128xf32>,
    return
  }
  func.func @transform_0(%arg0: i32) -> (i32, i32) {
    %c0_i32 = arith.constant 0 : i32
    %c0_i32_0 = arith.constant 0 : i32
    return %arg0, %c0_i32 : i32, i32
  }
  func.func @transform_1(%arg0: i32) -> (i32, i32) {
    %c0_i32 = arith.constant 0 : i32
    %c0_i32_0 = arith.constant 0 : i32
    %c0_i32_1 = arith.constant 0 : i32
    return %c0_i32, %c0_i32_0 : i32, i32
  }
  func.func @transform_2(%arg0: i32) -> (i32, i32) {
    %c0_i32 = arith.constant 0 : i32
    %c0_i32_0 = arith.constant 0 : i32
    %c0_i32_1 = arith.constant 0 : i32
    return %c0_i32, %c0_i32_0 : i32, i32
  }
  func.func @transform_3(%arg0: i32) -> (i32, i32) {
    %c0_i32 = arith.constant 0 : i32
    %c0_i32_0 = arith.constant 0 : i32
    %c0_i32_1 = arith.constant 0 : i32
    return %c0_i32, %c0_i32_0 : i32, i32
  }
  func.func @transform_4(%arg0: i32) -> (i32, i32) {
    %c0_i32 = arith.constant 0 : i32
    %c0_i32_0 = arith.constant 0 : i32
    %c0_i32_1 = arith.constant 0 : i32
    return %c0_i32, %c0_i32_0 : i32, i32
  }
  func.func @transform_5(%arg0: i32) -> (i32, i32, i32) {
    %c0_i32 = arith.constant 0 : i32
    %c0_i32_0 = arith.constant 0 : i32
    %c0_i32_1 = arith.constant 0 : i32
    return %arg0, %c0_i32, %c0_i32_0 : i32, i32, i32
  }
}

</mosaic_0001>

<llo_original>
// kernel: tpu_custom_call.1
$region0: #{tpu_custom_call.1}
  #allocation0 [shape = 'u32[]', space=smem, size = 0x4, offset = 0x4, fixed_abs, tag = 'smem constant byte address 0x4 - core index']
  #allocation1 [shape = 'u32[144,128]{1,0:T(1,128)}', space=vmem, size = 0x12000, scoped, tag = 'internal scratch']
  #allocation2 [shape = 'f32[1,1]{1,0:T(1,128)S(6)}', space=smem, size = 0x200, scoped, tag = 'scoped memory for tpu_custom_call.1']
  %s0 = inlined_call_operand.vmem [shape: bf16[256,32], index: 0, kind: input, shape index: {}]
  %s1 = inlined_call_operand.vmem [shape: bf16[32,128], index: 1, kind: input, shape index: {}]
  %s2 = inlined_call_operand.vmem [shape: f32[1,128], index: 2, kind: input, shape index: {}]
  %s3 = inlined_call_operand.vmem [shape: bf16[1,128], index: 3, kind: input, shape index: {}]
  %s4 = inlined_call_operand.<no memory space> [shape: f32[1,1], index: 4, kind: input, shape index: {}]
  %s5 = inlined_call_operand.hbm [shape: f32[2,1,128], index: 5, kind: output, shape index: {}]
  %s6 = sld [smem:[#allocation0]]
  $region53: #{tpu_custom_call.1} parent=0
    _
  %s8 = ssub.s32 1, %s6
  %s9 = scalar_select 0, %s8, %s6
  %10 = sst [smem:[#allocation2]] %s4
  $region1: #{tpu_custom_call.1} parent=0
    #allocation3 [shape = 'u8[1024]{0}', space=vmem, size = 0x400, scoped, tag = 'output window, operand 0']
    #allocation4 [shape = 's32[2]{0}', space=sflag, size = 0x8, scoped, tag = 'scoped memory for tpu_custom_call.1']
    %11 = vsyncpa [#allocation4], 0
    %s12 = scalar_lea.sflag [#allocation4], 1
    %13 = vsyncpa %s12, 0
    loop: start=0, step=1, limit=4
    $region2: #{tpu_custom_call.1} parent=1 // loop_pre_header
      _
    $region3: #{tpu_custom_call.1} parent=1 // loop_header
      %s15 = sphi 0, %s19
      %p16 = scmp.ge.s32.totalorder %s15, 4
      %s25 = sphi 0, %s27
      %s28 = sphi 0, %s25
      %s29 = sphi 0, %s28
      %s45 = sphi 0, %s29
      %s49 = sphi 0, %s49
      %s51 = sphi 0, %s49
      %s52 = sphi 0, %s51
      %s66 = sphi 0, %s52
      %s70 = sphi 0, %s70
      %s72 = sphi 0, %s70
      %s73 = sphi 0, %s72
      %s87 = sphi 0, %s73
      %s91 = sphi 0, %s91
      %s93 = sphi 0, %s91
      %s94 = sphi 0, %s93
      %s108 = sphi 0, %s94
      %s112 = sphi 0, %s112
      %s114 = sphi 0, %s112
      %s115 = sphi 0, %s114
      %s129 = sphi 0, %s115
      %s135 = sphi 0, %s137
      %s138 = sphi 0, %s135
      %s139 = sphi 0, %s138
      %s155 = sphi 0, %s139
    $region4: #{tpu_custom_call.1} parent=1 // loop_header_branch
      %18 = sbr.rel (%p16) target = $region8
    $region5: #{tpu_custom_call.1} parent=1 // loop_body
      %s20 = ssub.s32 %s15, 1
      %s21 = ssub.s32 %s15, 2
      %s22 = sadd.s32 %s15, 1
      %s23 = ssub.s32 %s15, %s22
      %p24 = scmp.eq.s32.totalorder %s23, 0
      %s26 = sadd.s32 %s25, 1
      %s27 = scalar_select %p24, %s25, %s26
      %p30 = pneg %p24
      %p31 = scmp.eq.s32.totalorder %s15, 1
      %p32 = por %p30, %p31
      %p33 = scmp.ne.s32.totalorder %s25, %s28
      %p34 = scmp.eq.s32.totalorder %s15, 0
      %p35 = por %p33, %p34
      %p36 = scmp.ne.s32.totalorder %s25, %s28
      %p37 = scmp.eq.s32.totalorder %s20, 1
      %p38 = por %p36, %p37
      %p39 = scmp.ne.s32.totalorder %s28, %s29
      %p40 = scmp.eq.s32.totalorder %s20, 0
      %p41 = por %p39, %p40
      %p42 = scmp.ne.s32.totalorder %s28, %s29
      %p43 = scmp.eq.s32.totalorder %s21, 1
      %p44 = por %p42, %p43
      %p46 = scmp.ne.s32.totalorder %s29, %s45
      %p47 = scmp.eq.s32.totalorder %s21, 0
      %p48 = por %p46, %p47
      %s50 = sadd.s32 %s49, 1
      %p53 = scmp.eq.s32.totalorder %s15, 1
      %p54 = scmp.ne.s32.totalorder %s49, %s51
      %p55 = scmp.eq.s32.totalorder %s15, 0
      %p56 = por %p54, %p55
      %p57 = scmp.ne.s32.totalorder %s49, %s51
      %p58 = scmp.eq.s32.totalorder %s20, 1
      %p59 = por %p57, %p58
      %p60 = scmp.ne.s32.totalorder %s51, %s52
      %p61 = scmp.eq.s32.totalorder %s20, 0
      %p62 = por %p60, %p61
      %p63 = scmp.ne.s32.totalorder %s51, %s52
      %p64 = scmp.eq.s32.totalorder %s21, 1
      %p65 = por %p63, %p64
      %p67 = scmp.ne.s32.totalorder %s52, %s66
      %p68 = scmp.eq.s32.totalorder %s21, 0
      %p69 = por %p67, %p68
      %s71 = sadd.s32 %s70, 1
      %p74 = scmp.eq.s32.totalorder %s15, 1
      %p75 = scmp.ne.s32.totalorder %s70, %s72
      %p76 = scmp.eq.s32.totalorder %s15, 0
      %p77 = por %p75, %p76
      %p78 = scmp.ne.s32.totalorder %s70, %s72
      %p79 = scmp.eq.s32.totalorder %s20, 1
      %p80 = por %p78, %p79
      %p81 = scmp.ne.s32.totalorder %s72, %s73
      %p82 = scmp.eq.s32.totalorder %s20, 0
      %p83 = por %p81, %p82
      %p84 = scmp.ne.s32.totalorder %s72, %s73
      %p85 = scmp.eq.s32.totalorder %s21, 1
      %p86 = por %p84, %p85
      %p88 = scmp.ne.s32.totalorder %s73, %s87
      %p89 = scmp.eq.s32.totalorder %s21, 0
      %p90 = por %p88, %p89
      %s92 = sadd.s32 %s91, 1
      %p95 = scmp.eq.s32.totalorder %s15, 1
      %p96 = scmp.ne.s32.totalorder %s91, %s93
      %p97 = scmp.eq.s32.totalorder %s15, 0
      %p98 = por %p96, %p97
      %p99 = scmp.ne.s32.totalorder %s91, %s93
      %p100 = scmp.eq.s32.totalorder %s20, 1
      %p101 = por %p99, %p100
      %p102 = scmp.ne.s32.totalorder %s93, %s94
      %p103 = scmp.eq.s32.totalorder %s20, 0
      %p104 = por %p102, %p103
      %p105 = scmp.ne.s32.totalorder %s93, %s94
      %p106 = scmp.eq.s32.totalorder %s21, 1
      %p107 = por %p105, %p106
      %p109 = scmp.ne.s32.totalorder %s94, %s108
      %p110 = scmp.eq.s32.totalorder %s21, 0
      %p111 = por %p109, %p110
      %s113 = sadd.s32 %s112, 1
      %p116 = scmp.eq.s32.totalorder %s15, 1
      %p117 = scmp.ne.s32.totalorder %s112, %s114
      %p118 = scmp.eq.s32.totalorder %s15, 0
      %p119 = por %p117, %p118
      %p120 = scmp.ne.s32.totalorder %s112, %s114
      %p121 = scmp.eq.s32.totalorder %s20, 1
      %p122 = por %p120, %p121
      %p123 = scmp.ne.s32.totalorder %s114, %s115
      %p124 = scmp.eq.s32.totalorder %s20, 0
      %p125 = por %p123, %p124
      %p126 = scmp.ne.s32.totalorder %s114, %s115
      %p127 = scmp.eq.s32.totalorder %s21, 1
      %p128 = por %p126, %p127
      %p130 = scmp.ne.s32.totalorder %s115, %s129
      %p131 = scmp.eq.s32.totalorder %s21, 0
      %p132 = por %p130, %p131
      %s133 = ssub.s32 %s15, %s22
      %p134 = scmp.eq.s32.totalorder %s133, 0
      %s136 = sadd.s32 %s135, 1
      %s137 = scalar_select %p134, %s135, %s136
      %p140 = pneg %p134
      %p141 = scmp.eq.s32.totalorder %s15, 1
      %p142 = por %p140, %p141
      %p143 = scmp.ne.s32.totalorder %s135, %s138
      %p144 = scmp.eq.s32.totalorder %s15, 0
      %p145 = por %p143, %p144
      %p146 = scmp.ne.s32.totalorder %s135, %s138
      %p147 = scmp.eq.s32.totalorder %s20, 1
      %p148 = por %p146, %p147
      %p149 = scmp.ne.s32.totalorder %s138, %s139
      %p150 = scmp.eq.s32.totalorder %s20, 0
      %p151 = por %p149, %p150
      %p152 = scmp.ne.s32.totalorder %s138, %s139
      %p153 = scmp.eq.s32.totalorder %s21, 1
      %p154 = por %p152, %p153
      %p156 = scmp.ne.s32.totalorder %s139, %s155
      %p157 = scmp.eq.s32.totalorder %s21, 0
      %p158 = por %p156, %p157
      %p159 = scmp.le.s32.totalorder 1, %s15
      %p160 = scmp.lt.s32.totalorder %s15, 3
      %p161 = pnand %p159, %p160
      %p162 = pneg %p161
      // Predicated region
      $region9: #{tpu_custom_call.1} parent=5 // pred_check
        _
      $region10: #{tpu_custom_call.1} parent=5 // pred_check_branch
        %164 = sbr.rel (%p161) target = $region12
      $region11: #{tpu_custom_call.1} parent=5 // pred_region
        %s165 = ssub.s32 %s15, 1
        // Predicated region
        $region13: #{tpu_custom_call.1} parent=11 // pred_check
          %p166 = pneg %p62
        $region14: #{tpu_custom_call.1} parent=11 // pred_check_branch
          %168 = sbr.rel (%p166) target = $region16
        $region15: #{tpu_custom_call.1} parent=11 // pred_region
          _
        $region16: #{tpu_custom_call.1} parent=11 // pred_fallthru
          _
        // Predicated region
        $region17: #{tpu_custom_call.1} parent=11 // pred_check
          %p169 = pneg %p83
        $region18: #{tpu_custom_call.1} parent=11 // pred_check_branch
          %171 = sbr.rel (%p169) target = $region20
        $region19: #{tpu_custom_call.1} parent=11 // pred_region
          _
        $region20: #{tpu_custom_call.1} parent=11 // pred_fallthru
          _
        // Predicated region
        $region21: #{tpu_custom_call.1} parent=11 // pred_check
          %p172 = pneg %p104
        $region22: #{tpu_custom_call.1} parent=11 // pred_check_branch
          %174 = sbr.rel (%p172) target = $region24
        $region23: #{tpu_custom_call.1} parent=11 // pred_region
          _
        $region24: #{tpu_custom_call.1} parent=11 // pred_fallthru
          _
        // Predicated region
        $region25: #{tpu_custom_call.1} parent=11 // pred_check
          %p175 = pneg %p125
        $region26: #{tpu_custom_call.1} parent=11 // pred_check_branch
          %177 = sbr.rel (%p175) target = $region28
        $region27: #{tpu_custom_call.1} parent=11 // pred_region
          _
        $region28: #{tpu_custom_call.1} parent=11 // pred_fallthru
          _
      $region12: #{tpu_custom_call.1} parent=5 // pred_fallthru
        _
      %p178 = scmp.lt.s32.totalorder %s15, 2
      // Predicated region
      $region29: #{tpu_custom_call.1} parent=5 // pred_check
        %p179 = pneg %p178
      $region30: #{tpu_custom_call.1} parent=5 // pred_check_branch
        %181 = sbr.rel (%p179) target = $region32
      $region31: #{tpu_custom_call.1} parent=5 // pred_region
        // Predicated region
        $region33: #{tpu_custom_call.1} parent=31 // pred_check
          %p182 = pneg %p35
        $region34: #{tpu_custom_call.1} parent=31 // pred_check_branch
          %184 = sbr.rel (%p182) target = $region36
        $region35: #{tpu_custom_call.1} parent=31 // pred_region
          %s185 = smul.u32 16, %s15
          %p186 = scmp.lt.s32.totalorder %s185, 31
          %s187 = scalar_select %p186, %s185, 31
          %s188 = smul.addr %s187, 4
          %s189 = scalar_lea.vmem %s0, %s188
          %s190 = smul.u32 16, %s15
        $region36: #{tpu_custom_call.1} parent=31 // pred_fallthru
          _
      $region32: #{tpu_custom_call.1} parent=5 // pred_fallthru
        _
      %p191 = scmp.le.s32.totalorder 1, %s15
      %p192 = scmp.lt.s32.totalorder %s15, 3
      %p193 = pnand %p191, %p192
      %p194 = pneg %p193
      // Predicated region
      $region37: #{tpu_custom_call.1} parent=5 // pred_check
        _
      $region38: #{tpu_custom_call.1} parent=5 // pred_check_branch
        %196 = sbr.rel (%p193) target = $region40
      $region39: #{tpu_custom_call.1} parent=5 // pred_region
        %s197 = ssub.s32 %s15, 1
        %s198 = smul.u32 16, %s20
        %p199 = scmp.lt.s32.totalorder %s198, 31
        %s200 = scalar_select %p199, %s198, 31
        %s201 = smul.addr %s200, 4
        %s202 = scalar_lea.vmem %s0, %s201
        %p203 = pneg %p41
        %p204 = pneg %p38
        %p205 = pneg %p62
        %p206 = pneg %p59
        %p207 = pneg %p83
        %p208 = pneg %p80
        %p209 = pneg %p104
        %p210 = pneg %p101
        %p211 = pneg %p125
        %p212 = pneg %p122
        %p213 = pneg %p151
        %p214 = pneg %p148
        %s215 = sand.u32 %s138, 1
        %s216 = scalar_lea.sflag [#allocation4], %s215
        %s217 = sand.u32 %s138, 1
        %s218 = scalar_lea.vmem [#allocation3], %s217
        %s219 = smul.u32 16, %s20
        %p220 = scmp.lt.s32.totalorder %s219, 31
        %s221 = scalar_select %p220, %s219, 31
        %s222 = smul.addr %s221, 4
        %s223 = scalar_lea.vmem %s0, %s222
        %s224 = smul.u32 16, %s20
        %v226 = vld [vmem:[%s223] sm:$0xf]
        %v227 = vld [vmem:[%s223 + $0x4] sm:$0xf]
        %v228 = vld [vmem:[%s223 + $0x8] sm:$0xf]
        %v229 = vld [vmem:[%s223 + $0xc] sm:$0xf]
        %v230 = vld [vmem:[%s223 + $0x10] sm:$0xf]
        %v231 = vld [vmem:[%s223 + $0x14] sm:$0xf]
        %v232 = vld [vmem:[%s223 + $0x18] sm:$0xf]
        %v233 = vld [vmem:[%s223 + $0x1c] sm:$0xf]
        %v234 = vld [vmem:[%s223 + $0x20] sm:$0xf]
        %v235 = vld [vmem:[%s223 + $0x24] sm:$0xf]
        %v236 = vld [vmem:[%s223 + $0x28] sm:$0xf]
        %v237 = vld [vmem:[%s223 + $0x2c] sm:$0xf]
        %v238 = vld [vmem:[%s223 + $0x30] sm:$0xf]
        %v239 = vld [vmem:[%s223 + $0x34] sm:$0xf]
        %v240 = vld [vmem:[%s223 + $0x38] sm:$0xf]
        %v241 = vld [vmem:[%s223 + $0x3c] sm:$0xf]
        %v242 = vld [vmem:[%s1] sm:$0xf]
        %v243 = vld [vmem:[%s1 + $0x4] sm:$0xf]
        %v244 = vld [vmem:[%s1 + $0x8] sm:$0xf]
        %v245 = vld [vmem:[%s1 + $0xc] sm:$0xf]
        %v246 = vld [vmem:[%s2] sm:$0x1]
        %v248 = vlaneseq
        %v249 = vshrl.u32 %v248, 7
        %v250 = vsub.s32 0, %v249
        %v251 = vrot.slane %v246, %v250
        %v269 = vunpack.c.l.b16 %v226
        %v270 = vunpack.c.l.b16 %v227
        %v271 = vunpack.c.l.b16 %v228
        %v272 = vunpack.c.l.b16 %v229
        %v273 = vunpack.c.l.b16 %v230
        %v274 = vunpack.c.l.b16 %v231
        %v275 = vunpack.c.l.b16 %v232
        %v276 = vunpack.c.l.b16 %v233
        %v277 = vunpack.c.l.b16 %v234
        %v278 = vunpack.c.l.b16 %v235
        %v279 = vunpack.c.l.b16 %v236
        %v280 = vunpack.c.l.b16 %v237
        %v281 = vunpack.c.l.b16 %v238
        %v282 = vunpack.c.l.b16 %v239
        %v283 = vunpack.c.l.b16 %v240
        %v284 = vunpack.c.l.b16 %v241
        %v285 = vpack.c.b16 %v270, %v269
        %v286 = vpack.c.b16 %v272, %v271
        %v287 = vpack.c.b16 %v274, %v273
        %v288 = vpack.c.b16 %v276, %v275
        %v289 = vpack.c.b16 %v278, %v277
        %v290 = vpack.c.b16 %v280, %v279
        %v291 = vpack.c.b16 %v282, %v281
        %v292 = vpack.c.b16 %v284, %v283
        %v297 = vunpack.c.l.b16 %v242
        %v298 = vunpack.c.l.b16 %v243
        %v299 = vunpack.c.l.b16 %v244
        %v300 = vunpack.c.l.b16 %v245
        %v301 = vpack.c.b16 %v298, %v297
        %v302 = vpack.c.b16 %v300, %v299
        %vm305 = vcmask 261120
        %v307 = vsel %vm305, %v285, 0
        %v310 = vsel %vm305, %v286, 0
        %v313 = vsel %vm305, %v287, 0
        %v316 = vsel %vm305, %v288, 0
        %v319 = vsel %vm305, %v289, 0
        %v322 = vsel %vm305, %v290, 0
        %v325 = vsel %vm305, %v291, 0
        %v328 = vsel %vm305, %v292, 0
        %330 = vmatprep.subr.bf16.mxu0 0
        %331 = vmatpush1.bf16.msra.mxu0 %v301
        %332 = vmatprep.subr.bf16.mxu0 0
        %333 = vmatpush1.bf16.msra.mxu0 %v302
        %334 = vmatprep.subr.bf16.mxu0 0
        %335 = vmatpush1.bf16.msra.mxu0 0
        %336 = vmatprep.subr.bf16.mxu0 0
        %337 = vmatpush1.bf16.msra.mxu0 0
        %338 = vmatprep.subr.bf16.mxu0 0
        %339 = vmatpush1.bf16.msra.mxu0 0
        %340 = vmatprep.subr.bf16.mxu0 0
        %341 = vmatpush1.bf16.msra.mxu0 0
        %342 = vmatprep.subr.bf16.mxu0 0
        %343 = vmatpush1.bf16.msra.mxu0 0
        %344 = vmatprep.subr.bf16.mxu0 0
        %345 = vmatpush1.bf16.msra.mxu0 0
        %346 = vmatprep.subr.bf16.mxu0 0
        %347 = vmatpush1.bf16.msra.mxu0 0
        %348 = vmatprep.subr.bf16.mxu0 0
        %349 = vmatpush1.bf16.msra.mxu0 0
        %350 = vmatprep.subr.bf16.mxu0 0
        %351 = vmatpush1.bf16.msra.mxu0 0
        %352 = vmatprep.subr.bf16.mxu0 0
        %353 = vmatpush1.bf16.msra.mxu0 0
        %354 = vmatprep.subr.bf16.mxu0 0
        %355 = vmatpush1.bf16.msra.mxu0 0
        %356 = vmatprep.subr.bf16.mxu0 0
        %357 = vmatpush1.bf16.msra.mxu0 0
        %358 = vmatprep.subr.bf16.mxu0 0
        %359 = vmatpush1.bf16.msra.mxu0 0
        %360 = vmatprep.subr.bf16.mxu0 0
        %361 = vmatpush1.bf16.msra.mxu0 0
        %362 = vmatprep.mubr.bf16.mxu0 0
        %363 = vmatmul.mubr.bf16.gmra.mrb[0].mxu0 %v307
        %v364 = vpop.f32.mrb[0].mxu0
        %v365 = vadd.f32 %v251, %v364
        %v366 = vpop.f32.mrb[0].mxu0
        %v367 = vpop.f32.mrb[0].mxu0
        %v368 = vadd.f32 %v251, %v367
        %v369 = vpop.f32.mrb[0].mxu0
        %370 = vmatprep.mubr.bf16.mxu0 0
        %371 = vmatmul.mubr.bf16.gmra.mrb[0].mxu0 %v310
        %v372 = vpop.f32.mrb[0].mxu0
        %v373 = vadd.f32 %v251, %v372
        %v374 = vpop.f32.mrb[0].mxu0
        %v375 = vpop.f32.mrb[0].mxu0
        %v376 = vadd.f32 %v251, %v375
        %v377 = vpop.f32.mrb[0].mxu0
        %378 = vmatprep.mubr.bf16.mxu0 0
        %379 = vmatmul.mubr.bf16.gmra.mrb[0].mxu0 %v313
        %v380 = vpop.f32.mrb[0].mxu0
        %v381 = vadd.f32 %v251, %v380
        %v382 = vpop.f32.mrb[0].mxu0
        %v383 = vpop.f32.mrb[0].mxu0
        %v384 = vadd.f32 %v251, %v383
        %v385 = vpop.f32.mrb[0].mxu0
        %386 = vmatprep.mubr.bf16.mxu0 0
        %387 = vmatmul.mubr.bf16.gmra.mrb[0].mxu0 %v316
        %v388 = vpop.f32.mrb[0].mxu0
        %v389 = vadd.f32 %v251, %v388
        %v390 = vpop.f32.mrb[0].mxu0
        %v391 = vpop.f32.mrb[0].mxu0
        %v392 = vadd.f32 %v251, %v391
        %v393 = vpop.f32.mrb[0].mxu0
        %394 = vmatprep.mubr.bf16.mxu0 0
        %395 = vmatmul.mubr.bf16.gmra.mrb[0].mxu0 %v319
        %v396 = vpop.f32.mrb[0].mxu0
        %v397 = vadd.f32 %v251, %v396
        %v398 = vpop.f32.mrb[0].mxu0
        %v399 = vpop.f32.mrb[0].mxu0
        %v400 = vadd.f32 %v251, %v399
        %v401 = vpop.f32.mrb[0].mxu0
        %402 = vmatprep.mubr.bf16.mxu0 0
        %403 = vmatmul.mubr.bf16.gmra.mrb[0].mxu0 %v322
        %v404 = vpop.f32.mrb[0].mxu0
        %v405 = vadd.f32 %v251, %v404
        %v406 = vpop.f32.mrb[0].mxu0
        %v407 = vpop.f32.mrb[0].mxu0
        %v408 = vadd.f32 %v251, %v407
        %v409 = vpop.f32.mrb[0].mxu0
        %410 = vmatprep.mubr.bf16.mxu0 0
        %411 = vmatmul.mubr.bf16.gmra.mrb[0].mxu0 %v325
        %v412 = vpop.f32.mrb[0].mxu0
        %v413 = vadd.f32 %v251, %v412
        %v414 = vpop.f32.mrb[0].mxu0
        %v415 = vpop.f32.mrb[0].mxu0
        %v416 = vadd.f32 %v251, %v415
        %v417 = vpop.f32.mrb[0].mxu0
        %418 = vmatprep.mubr.bf16.mxu0 0
        %419 = vmatmul.mubr.bf16.gmra.mrb[0].mxu0 %v328
        %v420 = vpop.f32.mrb[0].mxu0
        %v421 = vadd.f32 %v251, %v420
        %v422 = vpop.f32.mrb[0].mxu0
        %v423 = vpop.f32.mrb[0].mxu0
        %v424 = vadd.f32 %v251, %v423
        %v425 = vpop.f32.mrb[0].mxu0
        %426 = vdwg.mxu0
        %v427 = vmax.f32 %v365, 0.0
        %v428 = vmax.f32 %v368, 0.0
        %v429 = vmax.f32 %v373, 0.0
        %v430 = vmax.f32 %v376, 0.0
        %v431 = vmax.f32 %v381, 0.0
        %v432 = vmax.f32 %v384, 0.0
        %v433 = vmax.f32 %v389, 0.0
        %v434 = vmax.f32 %v392, 0.0
        %v435 = vmax.f32 %v397, 0.0
        %v436 = vmax.f32 %v400, 0.0
        %v437 = vmax.f32 %v405, 0.0
        %v438 = vmax.f32 %v408, 0.0
        %v439 = vmax.f32 %v413, 0.0
        %v440 = vmax.f32 %v416, 0.0
        %v441 = vmax.f32 %v421, 0.0
        %v442 = vmax.f32 %v424, 0.0
        %v443 = vld [vmem:[%s3] sm:$0x1]
        %v444 = vunpack.c.l.bf16 %v443
        %v445 = vlaneseq
        %v446 = vshrl.u32 %v445, 7
        %v447 = vsub.s32 0, %v446
        %v448 = vrot.slane %v444, %v447
        %v449 = vmul.f32 %v427, %v448
        %v450 = vmul.f32 %v428, %v448
        %v451 = vmul.f32 %v429, %v448
        %v452 = vmul.f32 %v430, %v448
        %v453 = vmul.f32 %v431, %v448
        %v454 = vmul.f32 %v432, %v448
        %v455 = vmul.f32 %v433, %v448
        %v456 = vmul.f32 %v434, %v448
        %v457 = vmul.f32 %v435, %v448
        %v458 = vmul.f32 %v436, %v448
        %v459 = vmul.f32 %v437, %v448
        %v460 = vmul.f32 %v438, %v448
        %v461 = vmul.f32 %v439, %v448
        %v462 = vmul.f32 %v440, %v448
        %v463 = vmul.f32 %v441, %v448
        %v464 = vmul.f32 %v442, %v448
        %465 = vadd.xlane.f32.xlu0 %v449
        %v466 = vpop.xlane.xlu0 %465
        %467 = vadd.xlane.f32.xlu0 %v450
        %v468 = vpop.xlane.xlu0 %467
        %469 = vadd.xlane.f32.xlu0 %v451
        %v470 = vpop.xlane.xlu0 %469
        %471 = vadd.xlane.f32.xlu0 %v452
        %v472 = vpop.xlane.xlu0 %471
        %473 = vadd.xlane.f32.xlu0 %v453
        %v474 = vpop.xlane.xlu0 %473
        %475 = vadd.xlane.f32.xlu0 %v454
        %v476 = vpop.xlane.xlu0 %475
        %477 = vadd.xlane.f32.xlu0 %v455
        %v478 = vpop.xlane.xlu0 %477
        %479 = vadd.xlane.f32.xlu0 %v456
        %v480 = vpop.xlane.xlu0 %479
        %481 = vadd.xlane.f32.xlu0 %v457
        %v482 = vpop.xlane.xlu0 %481
        %483 = vadd.xlane.f32.xlu0 %v458
        %v484 = vpop.xlane.xlu0 %483
        %485 = vadd.xlane.f32.xlu0 %v459
        %v486 = vpop.xlane.xlu0 %485
        %487 = vadd.xlane.f32.xlu0 %v460
        %v488 = vpop.xlane.xlu0 %487
        %489 = vadd.xlane.f32.xlu0 %v461
        %v490 = vpop.xlane.xlu0 %489
        %491 = vadd.xlane.f32.xlu0 %v462
        %v492 = vpop.xlane.xlu0 %491
        %493 = vadd.xlane.f32.xlu0 %v463
        %v494 = vpop.xlane.xlu0 %493
        %495 = vadd.xlane.f32.xlu0 %v464
        %v496 = vpop.xlane.xlu0 %495
        %s497 = sld [smem:[#allocation2]]
        %v498 = vstv %s497
        %v499 = vadd.f32 %v466, %v498
        %v500 = vadd.f32 %v468, %v498
        %v501 = vadd.f32 %v470, %v498
        %v502 = vadd.f32 %v472, %v498
        %v503 = vadd.f32 %v474, %v498
        %v504 = vadd.f32 %v476, %v498
        %v505 = vadd.f32 %v478, %v498
        %v506 = vadd.f32 %v480, %v498
        %v507 = vadd.f32 %v482, %v498
        %v508 = vadd.f32 %v484, %v498
        %v509 = vadd.f32 %v486, %v498
        %v510 = vadd.f32 %v488, %v498
        %v511 = vadd.f32 %v490, %v498
        %v512 = vadd.f32 %v492, %v498
        %v513 = vadd.f32 %v494, %v498
        %v514 = vadd.f32 %v496, %v498
        %v531 = vlaneseq
        %v532 = vand.u32 %v531, 127
        %v533 = vlaneseq
        %v534 = vshrl.u32 %v533, 7
        %v535 = vsub.s32 %v532, %v534
        %v536 = vrot.slane %v499, %v535
        %v537 = vadd.s32 %v532, 4294967288
        %v538 = vlaneseq
        %v539 = vshrl.u32 %v538, 7
        %v540 = vsub.s32 %v537, %v539
        %v541 = vrot.slane %v500, %v540
        %vm542 = vcmask 130112
        %v543 = vsel %vm542, %v541, %v536
        %v544 = vadd.s32 %v532, 4294967280
        %v545 = vlaneseq
        %v546 = vshrl.u32 %v545, 7
        %v547 = vsub.s32 %v544, %v546
        %v548 = vrot.slane %v501, %v547
        %vm549 = vcmask 195712
        %v550 = vsel %vm549, %v548, %v543
        %v551 = vadd.s32 %v532, 4294967272
        %v552 = vlaneseq
        %v553 = vshrl.u32 %v552, 7
        %v554 = vsub.s32 %v551, %v553
        %v555 = vrot.slane %v502, %v554
        %vm556 = vcmask 261312
        %v557 = vsel %vm556, %v555, %v550
        %v558 = vadd.s32 %v532, 4294967264
        %v559 = vlaneseq
        %v560 = vshrl.u32 %v559, 7
        %v561 = vsub.s32 %v558, %v560
        %v562 = vrot.slane %v503, %v561
        %vm563 = vcmask 326912
        %v564 = vsel %vm563, %v562, %v557
        %v565 = vadd.s32 %v532, 4294967256
        %v566 = vlaneseq
        %v567 = vshrl.u32 %v566, 7
        %v568 = vsub.s32 %v565, %v567
        %v569 = vrot.slane %v504, %v568
        %vm570 = vcmask 392512
        %v571 = vsel %vm570, %v569, %v564
        %v572 = vadd.s32 %v532, 4294967248
        %v573 = vlaneseq
        %v574 = vshrl.u32 %v573, 7
        %v575 = vsub.s32 %v572, %v574
        %v576 = vrot.slane %v505, %v575
        %vm577 = vcmask 458112
        %v578 = vsel %vm577, %v576, %v571
        %v579 = vadd.s32 %v532, 4294967240
        %v580 = vlaneseq
        %v581 = vshrl.u32 %v580, 7
        %v582 = vsub.s32 %v579, %v581
        %v583 = vrot.slane %v506, %v582
        %vm584 = vcmask 523712
        %v585 = vsel %vm584, %v583, %v578
        %v586 = vadd.s32 %v532, 4294967232
        %v587 = vlaneseq
        %v588 = vshrl.u32 %v587, 7
        %v589 = vsub.s32 %v586, %v588
        %v590 = vrot.slane %v507, %v589
        %vm591 = vcmask 589312
        %v592 = vsel %vm591, %v590, %v585
        %v593 = vadd.s32 %v532, 4294967224
        %v594 = vlaneseq
        %v595 = vshrl.u32 %v594, 7
        %v596 = vsub.s32 %v593, %v595
        %v597 = vrot.slane %v508, %v596
        %vm598 = vcmask 654912
        %v599 = vsel %vm598, %v597, %v592
        %v600 = vadd.s32 %v532, 4294967216
        %v601 = vlaneseq
        %v602 = vshrl.u32 %v601, 7
        %v603 = vsub.s32 %v600, %v602
        %v604 = vrot.slane %v509, %v603
        %vm605 = vcmask 720512
        %v606 = vsel %vm605, %v604, %v599
        %v607 = vadd.s32 %v532, 4294967208
        %v608 = vlaneseq
        %v609 = vshrl.u32 %v608, 7
        %v610 = vsub.s32 %v607, %v609
        %v611 = vrot.slane %v510, %v610
        %vm612 = vcmask 786112
        %v613 = vsel %vm612, %v611, %v606
        %v614 = vadd.s32 %v532, 4294967200
        %v615 = vlaneseq
        %v616 = vshrl.u32 %v615, 7
        %v617 = vsub.s32 %v614, %v616
        %v618 = vrot.slane %v511, %v617
        %vm619 = vcmask 851712
        %v620 = vsel %vm619, %v618, %v613
        %v621 = vadd.s32 %v532, 4294967192
        %v622 = vlaneseq
        %v623 = vshrl.u32 %v622, 7
        %v624 = vsub.s32 %v621, %v623
        %v625 = vrot.slane %v512, %v624
        %vm626 = vcmask 917312
        %v627 = vsel %vm626, %v625, %v620
        %v628 = vadd.s32 %v532, 4294967184
        %v629 = vlaneseq
        %v630 = vshrl.u32 %v629, 7
        %v631 = vsub.s32 %v628, %v630
        %v632 = vrot.slane %v513, %v631
        %vm633 = vcmask 982912
        %v634 = vsel %vm633, %v632, %v627
        %v635 = vadd.s32 %v532, 4294967176
        %v636 = vlaneseq
        %v637 = vshrl.u32 %v636, 7
        %v638 = vsub.s32 %v635, %v637
        %v639 = vrot.slane %v514, %v638
        %vm640 = vcmask 1048512
        %v641 = vsel %vm640, %v639, %v634
        %643 = vst [vmem:[%s218] sm:$0x1] %v641
        %s644 = sand.u32 %s138, 1
        %s645 = scalar_lea.sflag [#allocation4], %s644
        %s646 = sand.u32 %s138, 1
        %s647 = scalar_lea.vmem [#allocation3], %s646
        // Predicated region
        $region41: #{tpu_custom_call.1} parent=39 // pred_check
          %p648 = pneg %p148
        $region42: #{tpu_custom_call.1} parent=39 // pred_check_branch
          %650 = sbr.rel (%p648) target = $region44
        $region43: #{tpu_custom_call.1} parent=39 // pred_region
          %s652 = ssub.s32 16, 16
          %653 = vsyncadd %s645, %s652
          %s654 = smul.addr %s20, 16
          %s655 = scalar_lea.hbm %s5, %s654
          %s657 = sshll.u32 %s647, 4
          %s658 = int_to_ptr.vmem [resolvable:$true] %s657
          %660 = dma.vmem_to_hbm [thread:$0]  %s658, 16, %s655, %s645
        $region44: #{tpu_custom_call.1} parent=39 // pred_fallthru
          _
      $region40: #{tpu_custom_call.1} parent=5 // pred_fallthru
        _
      %p661 = scmp.le.s32.totalorder 2, %s15
      // Predicated region
      $region45: #{tpu_custom_call.1} parent=5 // pred_check
        %p662 = pneg %p661
      $region46: #{tpu_custom_call.1} parent=5 // pred_check_branch
        %664 = sbr.rel (%p662) target = $region48
      $region47: #{tpu_custom_call.1} parent=5 // pred_region
        %s665 = ssub.s32 %s15, 2
        // Predicated region
        $region49: #{tpu_custom_call.1} parent=47 // pred_check
          %p666 = pneg %p154
        $region50: #{tpu_custom_call.1} parent=47 // pred_check_branch
          %668 = sbr.rel (%p666) target = $region52
        $region51: #{tpu_custom_call.1} parent=47 // pred_region
          %s669 = sand.u32 %s139, 1
          %s670 = scalar_lea.sflag [#allocation4], %s669
          %s671 = sand.u32 %s139, 1
          %s672 = scalar_lea.vmem [#allocation3], %s671
          %673 = dma.done %s670, 16
        $region52: #{tpu_custom_call.1} parent=47 // pred_fallthru
          _
      $region48: #{tpu_custom_call.1} parent=5 // pred_fallthru
        _
    $region6: #{tpu_custom_call.1} parent=1 // loop_footer
      %s19 = sadd.s32 1, %s15
    $region7: #{tpu_custom_call.1} parent=1 // loop_footer_branch
      %14 = sbr.rel target = $region3
    $region8: #{tpu_custom_call.1} parent=1 // loop_exit
      _
    %674 = vsyncpa [#allocation4], 1
    %s675 = scalar_lea.sflag [#allocation4], 1
    %676 = vsyncpa %s675, 1

</llo_original>
